<compile_context>
chip_gen: v7x
topology: tpu7x:2x2x1
jax: 0.10.0
libtpu: 0.0.40
codegen_flags: <defaults>
</compile_context>

<pallas_src>
import functools

import jax
import jax.numpy as jnp
from jax import lax
from jax.experimental import pallas as pl
from jax.experimental.pallas import tpu as pltpu


def _self_attention_kernel(q_ref, k_ref, v_ref, scores_ref, attn_ref,
                           s_scratch, acc_ref, *, scale, tq, seq_len,
                           num_chunks):
    qi = pl.program_id(1)
    q = q_ref[0]                                   # (TQ, H), input dtype

    # ---- Phase 1: QK^T over causally-active key chunks only ----------------
    for ki in range(num_chunks):
        lo = ki * tq

        @pl.when(ki <= qi)
        def _(lo=lo):
            k_chunk = k_ref[0, lo:lo + tq, :]      # (TQ, H), input dtype
            # Contract last dims -> no explicit transpose of K.
            s_chunk = lax.dot_general(
                q, k_chunk, (((1,), (1,)), ((), ())),
                preferred_element_type=jnp.float32)         # (TQ, TQ) f32
            s_scratch[:, lo:lo + tq] = s_chunk * scale

    # ---- Phase 2: causal mask + exact single-pass row softmax --------------
    row = qi * tq + lax.broadcasted_iota(jnp.int32, (tq, seq_len), 0)
    col = lax.broadcasted_iota(jnp.int32, (tq, seq_len), 1)
    # Columns in never-computed (skipped) key chunks always satisfy col > row,
    # so any stale scratch contents there are replaced by -inf before use.
    s = jnp.where(col <= row, s_scratch[...], -jnp.inf)
    m = jnp.max(s, axis=-1, keepdims=True)
    e = jnp.exp(s - m)                              # masked cols -> exactly 0
    denom = jnp.sum(e, axis=-1, keepdims=True)
    p = e * pl.reciprocal(denom, approx=True)       # EUP reciprocal
    scores_ref[0] = p.astype(scores_ref.dtype)      # single cast; reused below

    # ---- Phase 3: P @ V over causally-active key chunks only ---------------
    acc_ref[...] = jnp.zeros_like(acc_ref)
    for ki in range(num_chunks):
        lo = ki * tq

        @pl.when(ki <= qi)
        def _(lo=lo):
            p_chunk = scores_ref[0, :, lo:lo + tq]   # (TQ, TQ), out dtype
            v_chunk = v_ref[0, lo:lo + tq, :]        # (TQ, H),  input dtype
            acc_ref[...] += jnp.dot(p_chunk, v_chunk,
                                    preferred_element_type=jnp.float32)
    attn_ref[0] = acc_ref[...].astype(attn_ref.dtype)


def _vmem_need_bytes(tq, seq_len, hidden, in_bytes, out_bytes):
    """Estimate of live VMEM for one grid step (double-buffered blocks +
    scratch + in-kernel f32 temporaries)."""
    kv_blocks = 2 * seq_len * hidden * in_bytes * 2   # K, V blocks (x2 buffers)
    q_block = tq * hidden * in_bytes * 2
    scores_out = tq * seq_len * out_bytes * 2
    attn_out = tq * hidden * out_bytes * 2
    scratch = tq * seq_len * 4 + tq * hidden * 4      # score scratch + acc
    f32_temps = 3 * tq * seq_len * 4                  # s / e / p live values
    return kv_blocks + q_block + scores_out + attn_out + scratch + f32_temps


def _choose_tq(seq_len, hidden, in_bytes, out_bytes, budget):
    """Largest query tile (multiple of 8 lanes-of-sublanes) fitting the VMEM
    budget.  Prefers 256/128 (MXU-friendly on v6e/v7x, fine on v5e)."""
    cands = [c for c in (256, 128, 64, 32, 16, 8) if seq_len % c == 0]
    for c in cands:
        if _vmem_need_bytes(c, seq_len, hidden, in_bytes, out_bytes) <= budget:
            return c
    if cands:
        return cands[-1]
    return seq_len  # odd / tiny S: one tile covering the whole sequence


def self_attention(x, wq, wk, wv):
    """x: (B, S, D_in); wq/wk/wv: (D_in, H).

    Returns (scores (B, S, S), attention (B, S, H)) -- scores are the
    post-softmax probabilities, matching the PyTorch module.
    """
    B, S, D_in = x.shape
    H = wq.shape[1]
    scale = 1.0 / (float(H) ** 0.5)
    out_dtype = x.dtype
    in_bytes = jnp.dtype(x.dtype).itemsize
    out_bytes = jnp.dtype(out_dtype).itemsize

    # Generation-aware VMEM cap (64 MiB/TC on v7x, 128 MiB on v5e/v6e).
    try:
        vmem_cap = int(pltpu.get_tpu_info().vmem_capacity_bytes)
    except Exception:
        vmem_cap = 64 << 20   # conservative default (v7x)
    budget = int(vmem_cap * 0.85)

    TQ = _choose_tq(S, H, in_bytes, out_bytes, budget)
    need = _vmem_need_bytes(TQ, S, H, in_bytes, out_bytes)
    vmem_limit = int(min(vmem_cap, max(need + (2 << 20), 32 << 20)))

    # Q/K/V projections once, as plain XLA batched GEMMs (hoisted out of the
    # per-query-tile loop; efficient even for tiny D_in).
    q = jnp.einsum("bsd,dh->bsh", x, wq).astype(x.dtype)
    k = jnp.einsum("bsd,dh->bsh", x, wk).astype(x.dtype)
    v = jnp.einsum("bsd,dh->bsh", x, wv).astype(x.dtype)

    num_chunks = S // TQ
    kernel = functools.partial(_self_attention_kernel, scale=scale, tq=TQ,
                               seq_len=S, num_chunks=num_chunks)

    grid = (B, num_chunks)

    return pl.pallas_call(
        kernel,
        out_shape=(
            jax.ShapeDtypeStruct((B, S, S), out_dtype),
            jax.ShapeDtypeStruct((B, S, H), out_dtype),
        ),
        grid=grid,
        in_specs=[
            pl.BlockSpec((1, TQ, H), lambda b, qi: (b, qi, 0)),   # q tile
            pl.BlockSpec((1, S, H), lambda b, qi: (b, 0, 0)),     # full K
            pl.BlockSpec((1, S, H), lambda b, qi: (b, 0, 0)),     # full V
        ],
        out_specs=(
            pl.BlockSpec((1, TQ, S), lambda b, qi: (b, qi, 0)),   # scores
            pl.BlockSpec((1, TQ, H), lambda b, qi: (b, qi, 0)),   # attention
        ),
        scratch_shapes=[
            pltpu.VMEM((TQ, S), jnp.float32),   # pre-softmax score row tile
            pltpu.VMEM((TQ, H), jnp.float32),   # P @ V accumulator
        ],
        compiler_params=pltpu.CompilerParams(
            dimension_semantics=("parallel", "parallel"),
            vmem_limit_bytes=vmem_limit,
        ),
    )(q, k, v)


def _reference(x, wq, wk, wv):
    H = wq.shape[1]
    q = jnp.einsum("bsd,dh->bsh", x, wq)
    k = jnp.einsum("bsd,dh->bsh", x, wk)
    v = jnp.einsum("bsd,dh->bsh", x, wv)
    s = jnp.einsum("bqh,bkh->bqk", q, k) / (H ** 0.5)
    S = x.shape[1]
    mask = jnp.where(jnp.tril(jnp.ones((S, S))) == 1, 0.0, -jnp.inf)
    s = s + mask[None, :, :]
    p = jax.nn.softmax(s, axis=-1)
    attn = jnp.einsum("bqk,bkh->bqh", p, v)
    return p, attn


if __name__ == "__main__":
    # Small shapes consistent with the module's forward: (B, S, input_dim).
    B, S, D_in, H = 2, 8, 4, 32

    key = jax.random.PRNGKey(0)
    kx, kq, kk, kv = jax.random.split(key, 4)
    x = jax.random.normal(kx, (B, S, D_in), dtype=jnp.float32)
    # Weights stored as (D_in, H) == PyTorch Linear(D_in, H).weight.T
    wq = jax.random.normal(kq, (D_in, H), dtype=jnp.float32) * 0.1
    wk = jax.random.normal(kk, (D_in, H), dtype=jnp.float32) * 0.1
    wv = jax.random.normal(kv, (D_in, H), dtype=jnp.float32) * 0.1

    scores, attention = self_attention(x, wq, wk, wv)
    jax.block_until_ready((scores, attention))

    ref_scores, ref_attn = _reference(x, wq, wk, wv)
    # Tolerance accounts for the EUP approximate reciprocal in the softmax.
    assert jnp.allclose(scores, ref_scores, atol=2e-3, rtol=2e-3)
    assert jnp.allclose(attention, ref_attn, atol=2e-3, rtol=2e-3)

    print("KERNEL_OK")
</pallas_src>

<mosaic_0001>
module attributes {stable_mosaic.version = 11 : i64} {
  func.func @_self_attention_kernel(%arg0: i32, %arg1: i32, %arg2: memref<1x8x32xf32, #tpu.memory_space<vmem>>, %arg3: memref<1x8x32xf32, #tpu.memory_space<vmem>>, %arg4: memref<1x8x32xf32, #tpu.memory_space<vmem>>, %arg5: memref<1x8x8xf32, #tpu.memory_space<vmem>>, %arg6: memref<1x8x32xf32, #tpu.memory_space<vmem>>, %arg7: memref<8x8xf32, #tpu.memory_space<vmem>>, %arg8: memref<8x32xf32, #tpu.memory_space<vmem>>) attributes {dimension_semantics = [#tpu.dimension_semantics<parallel>, #tpu.dimension_semantics<parallel>], iteration_bounds = array<i64: 2, 1>, scalar_prefetch = 0 : i64, scratch_operands = 2 : i64, tpu.core_type = #tpu.core_type<tc>, window_params = [{transform_indices = @transform_0, window_bounds = array<i64: 1, 8, 32>}, {transform_indices = @transform_1, window_bounds = array<i64: 1, 8, 32>}, {transform_indices = @transform_2, window_bounds = array<i64: 1, 8, 32>}, {transform_indices = @transform_3, window_bounds = array<i64: 1, 8, 8>}, {transform_indices = @transform_4, window_bounds = array<i64: 1, 8, 32>}]} {
    %c0 = arith.constant 0 : index
    %c0_0 = arith.constant 0 : index
    %c0_1 = arith.constant 0 : index
    %0 = vector.load %arg2[%c0, %c0_0, %c0_1] : memref<1x8x32xf32, #tpu.memory_space<vmem>>, vector<1x8x32xf32>
    %1 = vector.shape_cast %0 : vector<1x8x32xf32> to vector<8x32xf32>
    %c0_i32 = arith.constant 0 : i32
    %2 = arith.cmpi sge, %arg1, %c0_i32 : i32
    %3 = arith.extui %2 : i1 to i32
    %c0_i32_2 = arith.constant 0 : i32
    %4 = arith.cmpi ne, %3, %c0_i32_2 : i32
    scf.if %4 {
      %c0_20 = arith.constant 0 : index
      %c0_21 = arith.constant 0 : index
      %c0_22 = arith.constant 0 : index
      %36 = vector.load %arg3[%c0_20, %c0_21, %c0_22] : memref<1x8x32xf32, #tpu.memory_space<vmem>>, vector<1x8x32xf32>
      %37 = vector.shape_cast %36 : vector<1x8x32xf32> to vector<8x32xf32>
      %cst_23 = arith.constant dense<0.000000e+00> : vector<8x8xf32>
      %38 = tpu.matmul %1, %37, %cst_23 {dimension_numbers = #tpu.dot_dimension_numbers<[1], [1], [0], [0], [0, 0, 1, 0], [], []>} : vector<8x32xf32>, vector<8x32xf32>, vector<8x8xf32> -> vector<8x8xf32>
      %cst_24 = arith.constant 0.176776692 : f32
      %39 = vector.broadcast %cst_24 : f32 to vector<8x8xf32>
      %40 = arith.mulf %38, %39 : vector<8x8xf32>
      %c0_25 = arith.constant 0 : index
      %c0_26 = arith.constant 0 : index
      %41 = vector.load %arg7[%c0_25, %c0_26] : memref<8x8xf32, #tpu.memory_space<vmem>>, vector<8x8xf32>
      tpu.vector_store %arg7[%c0_25, %c0_26], %40 {strides = array<i32>} : memref<8x8xf32, #tpu.memory_space<vmem>>, vector<8x8xf32>,
    } else {
    }
    %c8_i32 = arith.constant 8 : i32
    %5 = arith.muli %arg1, %c8_i32 : i32
    %6 = tpu.iota {dimensions = array<i32: 0>} : vector<8x8xi32>
    %7 = vector.broadcast %5 : i32 to vector<8x8xi32>
    %8 = arith.addi %7, %6 : vector<8x8xi32>
    %9 = tpu.iota {dimensions = array<i32: 1>} : vector<8x8xi32>
    %10 = arith.cmpi sle, %9, %8 : vector<8x8xi32>
    %c0_3 = arith.constant 0 : index
    %c0_4 = arith.constant 0 : index
    %11 = vector.load %arg7[%c0_3, %c0_4] : memref<8x8xf32, #tpu.memory_space<vmem>>, vector<8x8xf32>
    %cst = arith.constant 0xFF800000 : f32
    %12 = vector.broadcast %cst : f32 to vector<8x8xf32>
    %13 = arith.select %10, %11, %12 : vector<8x8xi1>, vector<8x8xf32>
    %cst_5 = arith.constant dense<0xFF800000> : vector<8xf32>
    %14 = vector.multi_reduction <maximumf>, %13, %cst_5 [1] : vector<8x8xf32> to vector<8xf32>
    %15 = vector.shape_cast %14 : vector<8xf32> to vector<8x1xf32>
    %16 = vector.broadcast %15 : vector<8x1xf32> to vector<8x8xf32>
    %17 = arith.subf %13, %16 : vector<8x8xf32>
    %18 = math.exp %17 : vector<8x8xf32>
    %cst_6 = arith.constant dense<0.000000e+00> : vector<8xf32>
    %19 = vector.multi_reduction <add>, %18, %cst_6 [1] : vector<8x8xf32> to vector<8xf32>
    %20 = vector.shape_cast %19 : vector<8xf32> to vector<8x1xf32>
    %21 = tpu.reciprocal %20 {approx = true} : vector<8x1xf32> -> vector<8x1xf32>
    %22 = vector.broadcast %21 : vector<8x1xf32> to vector<8x8xf32>
    %23 = arith.mulf %18, %22 : vector<8x8xf32>
    %c0_7 = arith.constant 0 : index
    %c0_8 = arith.constant 0 : index
    %c0_9 = arith.constant 0 : index
    %24 = vector.load %arg5[%c0_7, %c0_8, %c0_9] : memref<1x8x8xf32, #tpu.memory_space<vmem>>, vector<1x8x8xf32>
    %25 = vector.shape_cast %24 : vector<1x8x8xf32> to vector<8x8xf32>
    %26 = vector.shape_cast %23 : vector<8x8xf32> to vector<1x8x8xf32>
    tpu.vector_store %arg5[%c0_7, %c0_8, %c0_9], %26 {strides = array<i32>} : memref<1x8x8xf32, #tpu.memory_space<vmem>>, vector<1x8x8xf32>,
    %cst_10 = arith.constant 0.000000e+00 : f32
    %27 = vector.broadcast %cst_10 : f32 to vector<8x32xf32>
    %c0_11 = arith.constant 0 : index
    %c0_12 = arith.constant 0 : index
    %28 = vector.load %arg8[%c0_11, %c0_12] : memref<8x32xf32, #tpu.memory_space<vmem>>, vector<8x32xf32>
    tpu.vector_store %arg8[%c0_11, %c0_12], %27 {strides = array<i32>} : memref<8x32xf32, #tpu.memory_space<vmem>>, vector<8x32xf32>,
    %c0_i32_13 = arith.constant 0 : i32
    %29 = arith.cmpi sge, %arg1, %c0_i32_13 : i32
    %30 = arith.extui %29 : i1 to i32
    %c0_i32_14 = arith.constant 0 : i32
    %31 = arith.cmpi ne, %30, %c0_i32_14 : i32
    scf.if %31 {
      %c0_20 = arith.constant 0 : index
      %c0_21 = arith.constant 0 : index
      %c0_22 = arith.constant 0 : index
      %36 = vector.load %arg5[%c0_20, %c0_21, %c0_22] : memref<1x8x8xf32, #tpu.memory_space<vmem>>, vector<1x8x8xf32>
      %37 = vector.shape_cast %36 : vector<1x8x8xf32> to vector<8x8xf32>
      %c0_23 = arith.constant 0 : index
      %c0_24 = arith.constant 0 : index
      %c0_25 = arith.constant 0 : index
      %38 = vector.load %arg4[%c0_23, %c0_24, %c0_25] : memref<1x8x32xf32, #tpu.memory_space<vmem>>, vector<1x8x32xf32>
      %39 = vector.shape_cast %38 : vector<1x8x32xf32> to vector<8x32xf32>
      %c0_26 = arith.constant 0 : index
      %c0_27 = arith.constant 0 : index
      %40 = vector.load %arg8[%c0_26, %c0_27] : memref<8x32xf32, #tpu.memory_space<vmem>>, vector<8x32xf32>
      %cst_28 = arith.constant dense<0.000000e+00> : vector<8x32xf32>
      %41 = tpu.matmul %37, %39, %cst_28 {dimension_numbers = #tpu.dot_dimension_numbers<[1], [0], [0], [1], [0, 0, 1, 1], [], []>} : vector<8x8xf32>, vector<8x32xf32>, vector<8x32xf32> -> vector<8x32xf32>
      %42 = arith.addf %40, %41 : vector<8x32xf32>
      %c0_29 = arith.constant 0 : index
      %c0_30 = arith.constant 0 : index
      %43 = vector.load %arg8[%c0_29, %c0_30] : memref<8x32xf32, #tpu.memory_space<vmem>>, vector<8x32xf32>
      tpu.vector_store %arg8[%c0_29, %c0_30], %42 {strides = array<i32>} : memref<8x32xf32, #tpu.memory_space<vmem>>, vector<8x32xf32>,
    } else {
    }
    %c0_15 = arith.constant 0 : index
    %c0_16 = arith.constant 0 : index
    %32 = vector.load %arg8[%c0_15, %c0_16] : memref<8x32xf32, #tpu.memory_space<vmem>>, vector<8x32xf32>
    %c0_17 = arith.constant 0 : index
    %c0_18 = arith.constant 0 : index
    %c0_19 = arith.constant 0 : index
    %33 = vector.load %arg6[%c0_17, %c0_18, %c0_19] : memref<1x8x32xf32, #tpu.memory_space<vmem>>, vector<1x8x32xf32>
    %34 = vector.shape_cast %33 : vector<1x8x32xf32> to vector<8x32xf32>
    %35 = vector.shape_cast %32 : vector<8x32xf32> to vector<1x8x32xf32>
    tpu.vector_store %arg6[%c0_17, %c0_18, %c0_19], %35 {strides = array<i32>} : memref<1x8x32xf32, #tpu.memory_space<vmem>>, vector<1x8x32xf32>,
    return
  }
  func.func @transform_0(%arg0: i32, %arg1: i32) -> (i32, i32, i32) {
    %c0_i32 = arith.constant 0 : i32
    %c0_i32_0 = arith.constant 0 : i32
    return %arg0, %arg1, %c0_i32 : i32, i32, i32
  }
  func.func @transform_1(%arg0: i32, %arg1: i32) -> (i32, i32, i32) {
    %c0_i32 = arith.constant 0 : i32
    %c0_i32_0 = arith.constant 0 : i32
    %c0_i32_1 = arith.constant 0 : i32
    return %arg0, %c0_i32, %c0_i32_0 : i32, i32, i32
  }
  func.func @transform_2(%arg0: i32, %arg1: i32) -> (i32, i32, i32) {
    %c0_i32 = arith.constant 0 : i32
    %c0_i32_0 = arith.constant 0 : i32
    %c0_i32_1 = arith.constant 0 : i32
    return %arg0, %c0_i32, %c0_i32_0 : i32, i32, i32
  }
  func.func @transform_3(%arg0: i32, %arg1: i32) -> (i32, i32, i32) {
    %c0_i32 = arith.constant 0 : i32
    %c0_i32_0 = arith.constant 0 : i32
    return %arg0, %arg1, %c0_i32 : i32, i32, i32
  }
  func.func @transform_4(%arg0: i32, %arg1: i32) -> (i32, i32, i32) {
    %c0_i32 = arith.constant 0 : i32
    %c0_i32_0 = arith.constant 0 : i32
    return %arg0, %arg1, %c0_i32 : i32, i32, i32
  }
}

</mosaic_0001>

<llo_original>
// kernel: tpu_custom_call.1
$region0: #{tpu_custom_call.1}
  #allocation0 [shape = 'u32[]', space=smem, size = 0x4, offset = 0x4, fixed_abs, tag = 'smem constant byte address 0x4 - core index']
  #allocation1 [shape = 'u32[144,128]{1,0:T(1,128)}', space=vmem, size = 0x12000, scoped, tag = 'internal scratch']
  #allocation2 [shape = 'f32[8,8]{1,0:T(8,128)}', space=vmem, size = 0x1000, scoped, tag = 'scratch operand']
  #allocation3 [shape = 'f32[8,32]{1,0:T(8,128)}', space=vmem, size = 0x1000, scoped, tag = 'scratch operand']
  %s0 = inlined_call_operand.hbm [shape: f32[2,8,32], index: 0, kind: input, shape index: {}]
  %s1 = inlined_call_operand.hbm [shape: f32[2,8,32], index: 1, kind: input, shape index: {}]
  %s2 = inlined_call_operand.hbm [shape: f32[2,8,32], index: 2, kind: input, shape index: {}]
  %s3 = inlined_call_operand.hbm [shape: f32[2,8,8], index: 3, kind: output, shape index: {0}]
  %s4 = inlined_call_operand.hbm [shape: f32[2,8,32], index: 4, kind: output, shape index: {1}]
  %5 = xla_tuple %s3, %s4
  %s6 = sld [smem:[#allocation0]]
  $region73: #{tpu_custom_call.1} parent=0
    _
  %s8 = ssub.s32 1, %s6
  %s9 = scalar_select 0, %s8, %s6
  $region1: #{tpu_custom_call.1} parent=0
    #allocation4 [shape = 'u8[8192]{0}', space=vmem, size = 0x2000, scoped, tag = 'input window, operand 0']
    #allocation5 [shape = 's32[2]{0}', space=sflag, size = 0x8, scoped, tag = 'scoped memory for tpu_custom_call.1']
    #allocation6 [shape = 's32[2]{0}', space=sflag, size = 0x8, scoped, tag = 'scoped memory for tpu_custom_call.1']
    #allocation7 [shape = 'u8[8192]{0}', space=vmem, size = 0x2000, scoped, tag = 'input window, operand 1']
    #allocation8 [shape = 's32[2]{0}', space=sflag, size = 0x8, scoped, tag = 'scoped memory for tpu_custom_call.1']
    #allocation9 [shape = 'u8[8192]{0}', space=vmem, size = 0x2000, scoped, tag = 'input window, operand 2']
    #allocation10 [shape = 'u8[8192]{0}', space=vmem, size = 0x2000, scoped, tag = 'output window, operand 0']
    #allocation11 [shape = 'u8[8192]{0}', space=vmem, size = 0x2000, scoped, tag = 'output window, operand 1']
    #allocation12 [shape = 's32[2]{0}', space=sflag, size = 0x8, scoped, tag = 'scoped memory for tpu_custom_call.1']
    %10 = vsyncpa [#allocation5], 0
    %s11 = scalar_lea.sflag [#allocation5], 1
    %12 = vsyncpa %s11, 0
    %13 = vsyncpa [#allocation8], 0
    %s14 = scalar_lea.sflag [#allocation8], 1
    %15 = vsyncpa %s14, 0
    %16 = vsyncpa [#allocation6], 0
    %s17 = scalar_lea.sflag [#allocation6], 1
    %18 = vsyncpa %s17, 0
    %19 = vsyncpa [#allocation12], 0
    %s20 = scalar_lea.sflag [#allocation12], 1
    %21 = vsyncpa %s20, 0
    loop: start=0, step=1, limit=4
    $region2: #{tpu_custom_call.1} parent=1 // loop_pre_header
      _
    $region3: #{tpu_custom_call.1} parent=1 // loop_header
      %s23 = sphi 0, %s27
      %p24 = scmp.ge.s32.totalorder %s23, 4
      %s30 = sphi 0, %s42
      %s31 = sphi 0, %s38
      %s32 = sphi 0, %s30
      %s33 = sphi 0, %s31
      %s34 = sphi 0, %s32
      %s35 = sphi 0, %s33
      %s47 = sphi 0, %s49
      %s50 = sphi 0, %s47
      %s51 = sphi 0, %s50
      %s67 = sphi 0, %s51
      %s73 = sphi 0, %s75
      %s76 = sphi 0, %s73
      %s77 = sphi 0, %s76
      %s93 = sphi 0, %s77
      %s99 = sphi 0, %s101
      %s102 = sphi 0, %s99
      %s103 = sphi 0, %s102
      %s119 = sphi 0, %s103
      %s127 = sphi 0, %s129
      %s130 = sphi 0, %s127
      %s131 = sphi 0, %s130
      %s147 = sphi 0, %s131
      %s155 = sphi 0, %s157
      %s158 = sphi 0, %s155
      %s159 = sphi 0, %s158
      %s175 = sphi 0, %s159
    $region4: #{tpu_custom_call.1} parent=1 // loop_header_branch
      %26 = sbr.rel (%p24) target = $region8
    $region5: #{tpu_custom_call.1} parent=1 // loop_body
      %s28 = ssub.s32 %s23, 1
      %s29 = ssub.s32 %s23, 2
      %s36 = sadd.s32 1, %s31
      %p37 = scmp.ge.s32.totalorder %s36, 1
      %s38 = scalar_select %p37, 0, %s36
      %s39 = sadd.s32 1, %s30
      %s40 = scalar_select %p37, %s39, %s30
      %p41 = scmp.ge.s32.totalorder %s40, 2
      %s42 = scalar_select %p41, 0, %s40
      %s43 = ssub.s32 %s30, %s42
      %s44 = ssub.s32 %s31, %s38
      %s45 = sor.u32 %s43, %s44
      %p46 = scmp.eq.s32.totalorder %s45, 0
      %s48 = sadd.s32 %s47, 1
      %s49 = scalar_select %p46, %s47, %s48
      %p52 = pneg %p46
      %p53 = scmp.eq.s32.totalorder %s23, 1
      %p54 = por %p52, %p53
      %p55 = scmp.ne.s32.totalorder %s47, %s50
      %p56 = scmp.eq.s32.totalorder %s23, 0
      %p57 = por %p55, %p56
      %p58 = scmp.ne.s32.totalorder %s47, %s50
      %p59 = scmp.eq.s32.totalorder %s28, 1
      %p60 = por %p58, %p59
      %p61 = scmp.ne.s32.totalorder %s50, %s51
      %p62 = scmp.eq.s32.totalorder %s28, 0
      %p63 = por %p61, %p62
      %p64 = scmp.ne.s32.totalorder %s50, %s51
      %p65 = scmp.eq.s32.totalorder %s29, 1
      %p66 = por %p64, %p65
      %p68 = scmp.ne.s32.totalorder %s51, %s67
      %p69 = scmp.eq.s32.totalorder %s29, 0
      %p70 = por %p68, %p69
      %s71 = ssub.s32 %s30, %s42
      %p72 = scmp.eq.s32.totalorder %s71, 0
      %s74 = sadd.s32 %s73, 1
      %s75 = scalar_select %p72, %s73, %s74
      %p78 = pneg %p72
      %p79 = scmp.eq.s32.totalorder %s23, 1
      %p80 = por %p78, %p79
      %p81 = scmp.ne.s32.totalorder %s73, %s76
      %p82 = scmp.eq.s32.totalorder %s23, 0
      %p83 = por %p81, %p82
      %p84 = scmp.ne.s32.totalorder %s73, %s76
      %p85 = scmp.eq.s32.totalorder %s28, 1
      %p86 = por %p84, %p85
      %p87 = scmp.ne.s32.totalorder %s76, %s77
      %p88 = scmp.eq.s32.totalorder %s28, 0
      %p89 = por %p87, %p88
      %p90 = scmp.ne.s32.totalorder %s76, %s77
      %p91 = scmp.eq.s32.totalorder %s29, 1
      %p92 = por %p90, %p91
      %p94 = scmp.ne.s32.totalorder %s77, %s93
      %p95 = scmp.eq.s32.totalorder %s29, 0
      %p96 = por %p94, %p95
      %s97 = ssub.s32 %s30, %s42
      %p98 = scmp.eq.s32.totalorder %s97, 0
      %s100 = sadd.s32 %s99, 1
      %s101 = scalar_select %p98, %s99, %s100
      %p104 = pneg %p98
      %p105 = scmp.eq.s32.totalorder %s23, 1
      %p106 = por %p104, %p105
      %p107 = scmp.ne.s32.totalorder %s99, %s102
      %p108 = scmp.eq.s32.totalorder %s23, 0
      %p109 = por %p107, %p108
      %p110 = scmp.ne.s32.totalorder %s99, %s102
      %p111 = scmp.eq.s32.totalorder %s28, 1
      %p112 = por %p110, %p111
      %p113 = scmp.ne.s32.totalorder %s102, %s103
      %p114 = scmp.eq.s32.totalorder %s28, 0
      %p115 = por %p113, %p114
      %p116 = scmp.ne.s32.totalorder %s102, %s103
      %p117 = scmp.eq.s32.totalorder %s29, 1
      %p118 = por %p116, %p117
      %p120 = scmp.ne.s32.totalorder %s103, %s119
      %p121 = scmp.eq.s32.totalorder %s29, 0
      %p122 = por %p120, %p121
      %s123 = ssub.s32 %s30, %s42
      %s124 = ssub.s32 %s31, %s38
      %s125 = sor.u32 %s123, %s124
      %p126 = scmp.eq.s32.totalorder %s125, 0
      %s128 = sadd.s32 %s127, 1
      %s129 = scalar_select %p126, %s127, %s128
      %p132 = pneg %p126
      %p133 = scmp.eq.s32.totalorder %s23, 1
      %p134 = por %p132, %p133
      %p135 = scmp.ne.s32.totalorder %s127, %s130
      %p136 = scmp.eq.s32.totalorder %s23, 0
      %p137 = por %p135, %p136
      %p138 = scmp.ne.s32.totalorder %s127, %s130
      %p139 = scmp.eq.s32.totalorder %s28, 1
      %p140 = por %p138, %p139
      %p141 = scmp.ne.s32.totalorder %s130, %s131
      %p142 = scmp.eq.s32.totalorder %s28, 0
      %p143 = por %p141, %p142
      %p144 = scmp.ne.s32.totalorder %s130, %s131
      %p145 = scmp.eq.s32.totalorder %s29, 1
      %p146 = por %p144, %p145
      %p148 = scmp.ne.s32.totalorder %s131, %s147
      %p149 = scmp.eq.s32.totalorder %s29, 0
      %p150 = por %p148, %p149
      %s151 = ssub.s32 %s30, %s42
      %s152 = ssub.s32 %s31, %s38
      %s153 = sor.u32 %s151, %s152
      %p154 = scmp.eq.s32.totalorder %s153, 0
      %s156 = sadd.s32 %s155, 1
      %s157 = scalar_select %p154, %s155, %s156
      %p160 = pneg %p154
      %p161 = scmp.eq.s32.totalorder %s23, 1
      %p162 = por %p160, %p161
      %p163 = scmp.ne.s32.totalorder %s155, %s158
      %p164 = scmp.eq.s32.totalorder %s23, 0
      %p165 = por %p163, %p164
      %p166 = scmp.ne.s32.totalorder %s155, %s158
      %p167 = scmp.eq.s32.totalorder %s28, 1
      %p168 = por %p166, %p167
      %p169 = scmp.ne.s32.totalorder %s158, %s159
      %p170 = scmp.eq.s32.totalorder %s28, 0
      %p171 = por %p169, %p170
      %p172 = scmp.ne.s32.totalorder %s158, %s159
      %p173 = scmp.eq.s32.totalorder %s29, 1
      %p174 = por %p172, %p173
      %p176 = scmp.ne.s32.totalorder %s159, %s175
      %p177 = scmp.eq.s32.totalorder %s29, 0
      %p178 = por %p176, %p177
      %p179 = scmp.le.s32.totalorder 1, %s23
      %p180 = scmp.lt.s32.totalorder %s23, 3
      %p181 = pnand %p179, %p180
      %p182 = pneg %p181
      // Predicated region
      $region9: #{tpu_custom_call.1} parent=5 // pred_check
        _
      $region10: #{tpu_custom_call.1} parent=5 // pred_check_branch
        %184 = sbr.rel (%p181) target = $region12
      $region11: #{tpu_custom_call.1} parent=5 // pred_region
        %s185 = ssub.s32 %s23, 1
      $region12: #{tpu_custom_call.1} parent=5 // pred_fallthru
        _
      %p186 = scmp.lt.s32.totalorder %s23, 2
      // Predicated region
      $region13: #{tpu_custom_call.1} parent=5 // pred_check
        %p187 = pneg %p186
      $region14: #{tpu_custom_call.1} parent=5 // pred_check_branch
        %189 = sbr.rel (%p187) target = $region16
      $region15: #{tpu_custom_call.1} parent=5 // pred_region
        // Predicated region
        $region17: #{tpu_custom_call.1} parent=15 // pred_check
          %p190 = pneg %p57
        $region18: #{tpu_custom_call.1} parent=15 // pred_check_branch
          %192 = sbr.rel (%p190) target = $region20
        $region19: #{tpu_custom_call.1} parent=15 // pred_region
          %s193 = sand.u32 %s47, 1
          %s194 = scalar_lea.sflag [#allocation5], %s193
          %s195 = sand.u32 %s47, 1
          %s196 = smul.addr %s195, 8
          %s197 = scalar_lea.vmem [#allocation4], %s196
          %s199 = ssub.s32 128, 128
          %200 = vsyncadd %s194, %s199
          %s201 = sadd.s32 %s31, %s30
          %s202 = smul.addr %s201, 128
          %s203 = scalar_lea.hbm %s0, %s202
          %s205 = sshll.u32 %s197, 4
          %s206 = int_to_ptr.vmem [resolvable:$true] %s205
          %208 = dma.hbm_to_vmem [thread:$0]  %s203, 128, %s206, %s194
        $region20: #{tpu_custom_call.1} parent=15 // pred_fallthru
          _
        // Predicated region
        $region21: #{tpu_custom_call.1} parent=15 // pred_check
          %p209 = pneg %p83
        $region22: #{tpu_custom_call.1} parent=15 // pred_check_branch
          %211 = sbr.rel (%p209) target = $region24
        $region23: #{tpu_custom_call.1} parent=15 // pred_region
          %s212 = sand.u32 %s23, 1
          %s213 = scalar_lea.sflag [#allocation8], %s212
          %s214 = sand.u32 %s73, 1
          %s215 = smul.addr %s214, 8
          %s216 = scalar_lea.vmem [#allocation7], %s215
          %s218 = ssub.s32 128, 128
          %219 = vsyncadd %s213, %s218
          %s220 = smul.addr %s30, 128
          %s221 = scalar_lea.hbm %s1, %s220
          %s223 = sshll.u32 %s216, 4
          %s224 = int_to_ptr.vmem [resolvable:$true] %s223
          %226 = dma.hbm_to_vmem [thread:$0]  %s221, 128, %s224, %s213
        $region24: #{tpu_custom_call.1} parent=15 // pred_fallthru
          _
        // Predicated region
        $region25: #{tpu_custom_call.1} parent=15 // pred_check
          %p227 = pneg %p109
        $region26: #{tpu_custom_call.1} parent=15 // pred_check_branch
          %229 = sbr.rel (%p227) target = $region28
        $region27: #{tpu_custom_call.1} parent=15 // pred_region
          %s230 = sand.u32 %s23, 1
          %s231 = scalar_lea.sflag [#allocation8], %s230
          %s232 = sand.u32 %s99, 1
          %s233 = smul.addr %s232, 8
          %s234 = scalar_lea.vmem [#allocation9], %s233
          %s236 = ssub.s32 128, 128
          %237 = vsyncadd %s231, %s236
          %s238 = smul.addr %s30, 128
          %s239 = scalar_lea.hbm %s2, %s238
          %s241 = sshll.u32 %s234, 4
          %s242 = int_to_ptr.vmem [resolvable:$true] %s241
          %244 = dma.hbm_to_vmem [thread:$0]  %s239, 128, %s242, %s231
        $region28: #{tpu_custom_call.1} parent=15 // pred_fallthru
          _
      $region16: #{tpu_custom_call.1} parent=5 // pred_fallthru
        _
      %p245 = scmp.le.s32.totalorder 1, %s23
      %p246 = scmp.lt.s32.totalorder %s23, 3
      %p247 = pnand %p245, %p246
      %p248 = pneg %p247
      // Predicated region
      $region29: #{tpu_custom_call.1} parent=5 // pred_check
        _
      $region30: #{tpu_custom_call.1} parent=5 // pred_check_branch
        %250 = sbr.rel (%p247) target = $region32
      $region31: #{tpu_custom_call.1} parent=5 // pred_region
        %s251 = ssub.s32 %s23, 1
        %s252 = sand.u32 %s50, 1
        %s253 = scalar_lea.sflag [#allocation5], %s252
        %s254 = sand.u32 %s50, 1
        %s255 = smul.addr %s254, 8
        %s256 = scalar_lea.vmem [#allocation4], %s255
        // Predicated region
        $region33: #{tpu_custom_call.1} parent=31 // pred_check
          %p257 = pneg %p63
        $region34: #{tpu_custom_call.1} parent=31 // pred_check_branch
          %259 = sbr.rel (%p257) target = $region36
        $region35: #{tpu_custom_call.1} parent=31 // pred_region
          %260 = dma.done %s253, 128
        $region36: #{tpu_custom_call.1} parent=31 // pred_fallthru
          _
        %s261 = sand.u32 %s28, 1
        %s262 = scalar_lea.sflag [#allocation8], %s261
        %s263 = sand.u32 %s76, 1
        %s264 = smul.addr %s263, 8
        %s265 = scalar_lea.vmem [#allocation7], %s264
        // Predicated region
        $region37: #{tpu_custom_call.1} parent=31 // pred_check
          %p266 = pneg %p89
        $region38: #{tpu_custom_call.1} parent=31 // pred_check_branch
          %268 = sbr.rel (%p266) target = $region40
        $region39: #{tpu_custom_call.1} parent=31 // pred_region
          %269 = dma.done %s262, 128
        $region40: #{tpu_custom_call.1} parent=31 // pred_fallthru
          _
        %s270 = sand.u32 %s28, 1
        %s271 = scalar_lea.sflag [#allocation8], %s270
        %s272 = sand.u32 %s102, 1
        %s273 = smul.addr %s272, 8
        %s274 = scalar_lea.vmem [#allocation9], %s273
        // Predicated region
        $region41: #{tpu_custom_call.1} parent=31 // pred_check
          %p275 = pneg %p115
        $region42: #{tpu_custom_call.1} parent=31 // pred_check_branch
          %277 = sbr.rel (%p275) target = $region44
        $region43: #{tpu_custom_call.1} parent=31 // pred_region
          %278 = dma.done %s271, 128
        $region44: #{tpu_custom_call.1} parent=31 // pred_fallthru
          _
        %s279 = sand.u32 %s50, 1
        %s280 = scalar_lea.sflag [#allocation5], %s279
        %s281 = sand.u32 %s50, 1
        %s282 = smul.addr %s281, 8
        %s283 = scalar_lea.vmem [#allocation4], %s282
        %p284 = pneg %p63
        %p285 = pneg %p60
        %s286 = sand.u32 %s28, 1
        %s287 = scalar_lea.sflag [#allocation8], %s286
        %s288 = sand.u32 %s76, 1
        %s289 = smul.addr %s288, 8
        %s290 = scalar_lea.vmem [#allocation7], %s289
        %p291 = pneg %p89
        %p292 = pneg %p86
        %s293 = sand.u32 %s28, 1
        %s294 = scalar_lea.sflag [#allocation8], %s293
        %s295 = sand.u32 %s102, 1
        %s296 = smul.addr %s295, 8
        %s297 = scalar_lea.vmem [#allocation9], %s296
        %p298 = pneg %p115
        %p299 = pneg %p112
        %p300 = pneg %p143
        %p301 = pneg %p140
        %s302 = sand.u32 %s130, 1
        %s303 = scalar_lea.sflag [#allocation6], %s302
        %s304 = sand.u32 %s130, 1
        %s305 = smul.addr %s304, 8
        %s306 = scalar_lea.vmem [#allocation10], %s305
        %p307 = pneg %p171
        %p308 = pneg %p168
        %s309 = sand.u32 %s158, 1
        %s310 = scalar_lea.sflag [#allocation12], %s309
        %s311 = sand.u32 %s158, 1
        %s312 = smul.addr %s311, 8
        %s313 = scalar_lea.vmem [#allocation11], %s312
        %v314 = vld [vmem:[%s256] sm:$0xff]
        %p315 = scmp.ge.s32.totalorder %s33, 0
        // Predicated region
        $region45: #{tpu_custom_call.1} parent=31 // pred_check
          %p316 = pneg %p315
        $region46: #{tpu_custom_call.1} parent=31 // pred_check_branch
          %318 = sbr.rel (%p316) target = $region48
        $region47: #{tpu_custom_call.1} parent=31 // pred_region
          %v319 = vld [vmem:[%s265] sm:$0xff]
          %vm320 = vcmask 261120
          %v322 = vsel %vm320, %v314, 0
          %v325 = vsel %vm320, %v319, 0
          %327 = vmatprep.subr.mxu0 0.0
          %328 = vmatpush1.xpose.msra.mxu0 %v325
          %329 = vmatprep.subr.mxu0 0.0
          %330 = vmatpush1.xpose.msra.mxu0 0.0
          %331 = vmatprep.subr.mxu0 0.0
          %332 = vmatpush1.xpose.msra.mxu0 0.0
          %333 = vmatprep.subr.mxu0 0.0
          %334 = vmatpush1.xpose.msra.mxu0 0.0
          %335 = vmatprep.subr.mxu0 0.0
          %336 = vmatpush1.xpose.msra.mxu0 0.0
          %337 = vmatprep.subr.mxu0 0.0
          %338 = vmatpush1.xpose.msra.mxu0 0.0
          %339 = vmatprep.subr.mxu0 0.0
          %340 = vmatpush1.xpose.msra.mxu0 0.0
          %341 = vmatprep.subr.mxu0 0.0
          %342 = vmatpush1.xpose.msra.mxu0 0.0
          %343 = vmatprep.subr.mxu0 0.0
          %344 = vmatpush1.xpose.msra.mxu0 0.0
          %345 = vmatprep.subr.mxu0 0.0
          %346 = vmatpush1.xpose.msra.mxu0 0.0
          %347 = vmatprep.subr.mxu0 0.0
          %348 = vmatpush1.xpose.msra.mxu0 0.0
          %349 = vmatprep.subr.mxu0 0.0
          %350 = vmatpush1.xpose.msra.mxu0 0.0
          %351 = vmatprep.subr.mxu0 0.0
          %352 = vmatpush1.xpose.msra.mxu0 0.0
          %353 = vmatprep.subr.mxu0 0.0
          %354 = vmatpush1.xpose.msra.mxu0 0.0
          %355 = vmatprep.subr.mxu0 0.0
          %356 = vmatpush1.xpose.msra.mxu0 0.0
          %357 = vmatprep.subr.mxu0 0.0
          %358 = vmatpush1.xpose.msra.mxu0 0.0
          %359 = vmatprep.subr.mxu0 0.0
          %360 = vmatpush1.xpose.msra.mxu0 0.0
          %361 = vmatprep.subr.mxu0 0.0
          %362 = vmatpush1.xpose.msra.mxu0 0.0
          %363 = vmatprep.subr.mxu0 0.0
          %364 = vmatpush1.xpose.msra.mxu0 0.0
          %365 = vmatprep.subr.mxu0 0.0
          %366 = vmatpush1.xpose.msra.mxu0 0.0
          %367 = vmatprep.subr.mxu0 0.0
          %368 = vmatpush1.xpose.msra.mxu0 0.0
          %369 = vmatprep.subr.mxu0 0.0
          %370 = vmatpush1.xpose.msra.mxu0 0.0
          %371 = vmatprep.subr.mxu0 0.0
          %372 = vmatpush1.xpose.msra.mxu0 0.0
          %373 = vmatprep.subr.mxu0 0.0
          %374 = vmatpush1.xpose.msra.mxu0 0.0
          %375 = vmatprep.subr.mxu0 0.0
          %376 = vmatpush1.xpose.msra.mxu0 0.0
          %377 = vmatprep.subr.mxu0 0.0
          %378 = vmatpush1.xpose.msra.mxu0 0.0
          %379 = vmatprep.subr.mxu0 0.0
          %380 = vmatpush1.xpose.msra.mxu0 0.0
          %381 = vmatprep.subr.mxu0 0.0
          %382 = vmatpush1.xpose.msra.mxu0 0.0
          %383 = vmatprep.subr.mxu0 0.0
          %384 = vmatpush1.xpose.msra.mxu0 0.0
          %385 = vmatprep.subr.mxu0 0.0
          %386 = vmatpush1.xpose.msra.mxu0 0.0
          %387 = vmatprep.subr.mxu0 0.0
          %388 = vmatpush1.xpose.msra.mxu0 0.0
          %389 = vmatprep.subr.mxu0 0.0
          %390 = vmatpush1.xpose.msra.mxu0 0.0
          %391 = vmatprep.mubr.f32.mxu0 0.0
          %392 = vmatmul.mubr.f32.gmra.mrb[0].mxu0 %v322
          %v393 = vpop.f32.mrb[0].mxu0
          %v394 = vadd.f32 0.0, %v393
          %v395 = vpop.f32.mrb[0].mxu0
          %396 = vdwg.mxu0
          %v397 = vmul.f32 %v394, 0.17677669
          %vm398 = vcmask 64512
          %399 = vst.msk [vmem:[#allocation2] sm:$0xff] %vm398, %v397
        $region48: #{tpu_custom_call.1} parent=31 // pred_fallthru
          _
        %s400 = smul.u32 %s33, 8
        %v401 = vlaneseq
        %v402 = vshrl.u32 %v401, 7
        %v403 = vstv %s400
        %v404 = vadd.s32 %v403, %v402
        %v405 = vlaneseq
        %v406 = vand.u32 %v405, 127
        %vm407 = vcmp.le.s32.totalorder %v406, %v404
        %v408 = vld [vmem:[#allocation2] sm:$0xff]
        %v409 = vsel %vm407, %v408, -inf
        %vm410 = vcmask 64512
        %v411 = vsel %vm410, %v409, -inf
        %412 = vmax.xlane.f32.xlu0 %v411
        %v413 = vpop.xlane.xlu0 %412
        %v414 = vsub.f32 %v409, %v413
        %v415 = vmul.f32 %v414, 1.442695
        %v416 = vpow.pop %v415
        %v417 = vsel %vm410, %v416, 0.0
        %418 = vadd.xlane.f32.xlu0 %v417
        %v419 = vpop.xlane.xlu0 %418
        %v420 = vrcp.pop %v419
        %v421 = vmul.f32 %v416, %v420
        %422 = vst.msk [vmem:[%s306] sm:$0xff] %vm410, %v421
        %vm423 = vcmask 261120
        %424 = vst.msk [vmem:[#allocation3] sm:$0xff] %vm423, 0.0
        // Predicated region
        $region49: #{tpu_custom_call.1} parent=31 // pred_check
          %p425 = pneg %p315
        $region50: #{tpu_custom_call.1} parent=31 // pred_check_branch
          %427 = sbr.rel (%p425) target = $region52
        $region51: #{tpu_custom_call.1} parent=31 // pred_region
          %v428 = vld [vmem:[%s306] sm:$0xff]
          %v429 = vld [vmem:[%s274] sm:$0xff]
          %v430 = vld [vmem:[#allocation3] sm:$0xff]
          %v432 = vsel %vm410, %v428, 0
          %434 = vmatprep.subr.mxu0 0.0
          %435 = vmatpush1.msra.mxu0 %v429
          %436 = vmatprep.subr.mxu0 0.0
          %437 = vmatpush1.msra.mxu0 0.0
          %438 = vmatprep.subr.mxu0 0.0
          %439 = vmatpush1.msra.mxu0 0.0
          %440 = vmatprep.subr.mxu0 0.0
          %441 = vmatpush1.msra.mxu0 0.0
          %442 = vmatprep.subr.mxu0 0.0
          %443 = vmatpush1.msra.mxu0 0.0
          %444 = vmatprep.subr.mxu0 0.0
          %445 = vmatpush1.msra.mxu0 0.0
          %446 = vmatprep.subr.mxu0 0.0
          %447 = vmatpush1.msra.mxu0 0.0
          %448 = vmatprep.subr.mxu0 0.0
          %449 = vmatpush1.msra.mxu0 0.0
          %450 = vmatprep.subr.mxu0 0.0
          %451 = vmatpush1.msra.mxu0 0.0
          %452 = vmatprep.subr.mxu0 0.0
          %453 = vmatpush1.msra.mxu0 0.0
          %454 = vmatprep.subr.mxu0 0.0
          %455 = vmatpush1.msra.mxu0 0.0
          %456 = vmatprep.subr.mxu0 0.0
          %457 = vmatpush1.msra.mxu0 0.0
          %458 = vmatprep.subr.mxu0 0.0
          %459 = vmatpush1.msra.mxu0 0.0
          %460 = vmatprep.subr.mxu0 0.0
          %461 = vmatpush1.msra.mxu0 0.0
          %462 = vmatprep.subr.mxu0 0.0
          %463 = vmatpush1.msra.mxu0 0.0
          %464 = vmatprep.subr.mxu0 0.0
          %465 = vmatpush1.msra.mxu0 0.0
          %466 = vmatprep.subr.mxu0 0.0
          %467 = vmatpush1.msra.mxu0 0.0
          %468 = vmatprep.subr.mxu0 0.0
          %469 = vmatpush1.msra.mxu0 0.0
          %470 = vmatprep.subr.mxu0 0.0
          %471 = vmatpush1.msra.mxu0 0.0
          %472 = vmatprep.subr.mxu0 0.0
          %473 = vmatpush1.msra.mxu0 0.0
          %474 = vmatprep.subr.mxu0 0.0
          %475 = vmatpush1.msra.mxu0 0.0
          %476 = vmatprep.subr.mxu0 0.0
          %477 = vmatpush1.msra.mxu0 0.0
          %478 = vmatprep.subr.mxu0 0.0
          %479 = vmatpush1.msra.mxu0 0.0
          %480 = vmatprep.subr.mxu0 0.0
          %481 = vmatpush1.msra.mxu0 0.0
          %482 = vmatprep.subr.mxu0 0.0
          %483 = vmatpush1.msra.mxu0 0.0
          %484 = vmatprep.subr.mxu0 0.0
          %485 = vmatpush1.msra.mxu0 0.0
          %486 = vmatprep.subr.mxu0 0.0
          %487 = vmatpush1.msra.mxu0 0.0
          %488 = vmatprep.subr.mxu0 0.0
          %489 = vmatpush1.msra.mxu0 0.0
          %490 = vmatprep.subr.mxu0 0.0
          %491 = vmatpush1.msra.mxu0 0.0
          %492 = vmatprep.subr.mxu0 0.0
          %493 = vmatpush1.msra.mxu0 0.0
          %494 = vmatprep.subr.mxu0 0.0
          %495 = vmatpush1.msra.mxu0 0.0
          %496 = vmatprep.subr.mxu0 0.0
          %497 = vmatpush1.msra.mxu0 0.0
          %498 = vmatprep.mubr.f32.mxu0 0.0
          %499 = vmatmul.mubr.f32.gmra.mrb[0].mxu0 %v432
          %v500 = vpop.f32.mrb[0].mxu0
          %v501 = vadd.f32 0.0, %v500
          %v502 = vpop.f32.mrb[0].mxu0
          %503 = vdwg.mxu0
          %v504 = vadd.f32 %v430, %v501
          %505 = vst.msk [vmem:[#allocation3] sm:$0xff] %vm423, %v504
        $region52: #{tpu_custom_call.1} parent=31 // pred_fallthru
          _
        %v506 = vld [vmem:[#allocation3] sm:$0xff]
        %507 = vst.msk [vmem:[%s313] sm:$0xff] %vm423, %v506
        %s508 = sand.u32 %s130, 1
        %s509 = scalar_lea.sflag [#allocation6], %s508
        %s510 = sand.u32 %s130, 1
        %s511 = smul.addr %s510, 8
        %s512 = scalar_lea.vmem [#allocation10], %s511
        %s513 = sand.u32 %s158, 1
        %s514 = scalar_lea.sflag [#allocation12], %s513
        %s515 = sand.u32 %s158, 1
        %s516 = smul.addr %s515, 8
        %s517 = scalar_lea.vmem [#allocation11], %s516
        // Predicated region
        $region53: #{tpu_custom_call.1} parent=31 // pred_check
          %p518 = pneg %p140
        $region54: #{tpu_custom_call.1} parent=31 // pred_check_branch
          %520 = sbr.rel (%p518) target = $region56
        $region55: #{tpu_custom_call.1} parent=31 // pred_region
          %s522 = ssub.s32 128, 128
          %523 = vsyncadd %s509, %s522
          %s524 = sadd.s32 %s33, %s32
          %s525 = smul.addr %s524, 128
          %s526 = scalar_lea.hbm %s3, %s525
          %s528 = sshll.u32 %s512, 4
          %s529 = int_to_ptr.vmem [resolvable:$true] %s528
          %531 = dma.vmem_to_hbm [thread:$0]  %s529, 128, %s526, %s509
        $region56: #{tpu_custom_call.1} parent=31 // pred_fallthru
          _
        // Predicated region
        $region57: #{tpu_custom_call.1} parent=31 // pred_check
          %p532 = pneg %p168
        $region58: #{tpu_custom_call.1} parent=31 // pred_check_branch
          %534 = sbr.rel (%p532) target = $region60
        $region59: #{tpu_custom_call.1} parent=31 // pred_region
          %s536 = ssub.s32 128, 128
          %537 = vsyncadd %s514, %s536
          %s538 = sadd.s32 %s33, %s32
          %s539 = smul.addr %s538, 128
          %s540 = scalar_lea.hbm %s4, %s539
          %s542 = sshll.u32 %s517, 4
          %s543 = int_to_ptr.vmem [resolvable:$true] %s542
          %545 = dma.vmem_to_hbm [thread:$0]  %s543, 128, %s540, %s514
        $region60: #{tpu_custom_call.1} parent=31 // pred_fallthru
          _
      $region32: #{tpu_custom_call.1} parent=5 // pred_fallthru
        _
      %p546 = scmp.le.s32.totalorder 2, %s23
      // Predicated region
      $region61: #{tpu_custom_call.1} parent=5 // pred_check
        %p547 = pneg %p546
      $region62: #{tpu_custom_call.1} parent=5 // pred_check_branch
        %549 = sbr.rel (%p547) target = $region64
      $region63: #{tpu_custom_call.1} parent=5 // pred_region
        %s550 = ssub.s32 %s23, 2
        // Predicated region
        $region65: #{tpu_custom_call.1} parent=63 // pred_check
          %p551 = pneg %p146
        $region66: #{tpu_custom_call.1} parent=63 // pred_check_branch
          %553 = sbr.rel (%p551) target = $region68
        $region67: #{tpu_custom_call.1} parent=63 // pred_region
          %s554 = sand.u32 %s131, 1
          %s555 = scalar_lea.sflag [#allocation6], %s554
          %s556 = sand.u32 %s131, 1
          %s557 = smul.addr %s556, 8
          %s558 = scalar_lea.vmem [#allocation10], %s557
          %559 = dma.done %s555, 128
        $region68: #{tpu_custom_call.1} parent=63 // pred_fallthru
          _
        // Predicated region
        $region69: #{tpu_custom_call.1} parent=63 // pred_check
          %p560 = pneg %p174
        $region70: #{tpu_custom_call.1} parent=63 // pred_check_branch
          %562 = sbr.rel (%p560) target = $region72
        $region71: #{tpu_custom_call.1} parent=63 // pred_region
          %s563 = sand.u32 %s159, 1
          %s564 = scalar_lea.sflag [#allocation12], %s563
          %s565 = sand.u32 %s159, 1
          %s566 = smul.addr %s565, 8
          %s567 = scalar_lea.vmem [#allocation11], %s566
          %568 = dma.done %s564, 128
        $region72: #{tpu_custom_call.1} parent=63 // pred_fallthru
          _
      $region64: #{tpu_custom_call.1} parent=5 // pred_fallthru
        _
    $region6: #{tpu_custom_call.1} parent=1 // loop_footer
      %s27 = sadd.s32 1, %s23
    $region7: #{tpu_custom_call.1} parent=1 // loop_footer_branch
      %22 = sbr.rel target = $region3
    $region8: #{tpu_custom_call.1} parent=1 // loop_exit
      _
    %569 = vsyncpa [#allocation5], 1
    %s570 = scalar_lea.sflag [#allocation5], 1
    %571 = vsyncpa %s570, 1
    %572 = vsyncpa [#allocation8], 1
    %s573 = scalar_lea.sflag [#allocation8], 1
    %574 = vsyncpa %s573, 1
    %575 = vsyncpa [#allocation6], 1
    %s576 = scalar_lea.sflag [#allocation6], 1
    %577 = vsyncpa %s576, 1
    %578 = vsyncpa [#allocation12], 1
    %s579 = scalar_lea.sflag [#allocation12], 1
    %580 = vsyncpa %s579, 1

</llo_original>
